<compile_context>
chip_gen: v5e
topology: v5e:2x2
jax: 0.10.0
libtpu: 0.0.40
codegen_flags: <defaults>
</compile_context>

<pallas_src>
import math

import jax
import jax.numpy as jnp
from jax.experimental import pallas as pl
from jax.experimental.pallas import tpu as pltpu


def _round_up(x: int, m: int) -> int:
    return ((x + m - 1) // m) * m


def ffn_kernel(x_ref, w1_ref, b1_ref, w2_ref, b2_ref, o_ref, h_ref):
    # x_ref : (tm, E)   tile of flattened input rows
    # w1_ref: (E, H)    Linear #1 weight, pre-transposed (in, out)   [resident]
    # b1_ref: (1, H)    f32
    # w2_ref: (H, tn)   Linear #2 weight slice, pre-transposed (in, out)
    # b2_ref: (1, tn)   f32
    # o_ref : (tm, tn)
    # h_ref : (tm, H)   VMEM scratch caching the hidden activation per row tile

    # Hidden activation computed once per row tile (inner j axis == 0).
    @pl.when(pl.program_id(1) == 0)
    def _():
        h = jnp.dot(x_ref[...], w1_ref[...], preferred_element_type=jnp.float32)
        h = jnp.maximum(h + b1_ref[...], 0.0)           # bias + ReLU in f32
        h_ref[...] = h.astype(h_ref.dtype)

    y = jnp.dot(h_ref[...], w2_ref[...], preferred_element_type=jnp.float32)
    y = y + b2_ref[...]
    # Dropout(p=0.0) -> identity.
    # TODO(synk): training-mode dropout (p > 0) would need pltpu.prng_seed /
    # pltpu.prng_random_bits masking here.
    o_ref[...] = y.astype(o_ref.dtype)


def feedforward_forward(x, w1, b1, w2, b2, *, row_tile=512, col_tile=2048,
                        compute_dtype=None):
    """FeedForward forward pass.

    x : (..., in_features)
    w1: (hidden, in_features)    PyTorch-style (out, in) weight of Linear #1
    b1: (hidden,)
    w2: (out_features, hidden)   PyTorch-style (out, in) weight of Linear #2
    b2: (out_features,)
    compute_dtype: optional dtype for the MXU operands (e.g. jnp.bfloat16).
    returns: (..., out_features) in x.dtype
    """
    *lead, E = x.shape
    H = w1.shape[0]
    O = w2.shape[0]
    M = math.prod(lead) if lead else 1

    cdt = jnp.dtype(compute_dtype) if compute_dtype is not None else jnp.dtype(x.dtype)
    out_dtype = x.dtype

    # Host-side prep: flatten rows, transpose weights to (in, out), cast once.
    x2d = x.reshape(M, E).astype(cdt)
    w1_t = w1.T.astype(cdt)                   # (E, H)
    w2_t = w2.T.astype(cdt)                   # (H, O)
    b1_r = b1.reshape(1, H).astype(jnp.float32)
    b2_r = b2.reshape(1, O).astype(jnp.float32)

    # ---- tile selection --------------------------------------------------
    # Row tile: big (512) to hit the DMA roofline / amortize grid overhead;
    # if that leaves a single grid step, halve it so the "parallel" axis can
    # split across two TensorCores (v7x).
    tm = min(row_tile, M)
    if pl.cdiv(M, tm) == 1 and M >= 16:
        tm = _round_up((M + 1) // 2, 8)
    grid_m = pl.cdiv(M, tm)

    # Output-column tile: keep W2 residency bounded (E*H + H*tn) for v7x.
    tn = O if O <= col_tile else col_tile
    grid_n = pl.cdiv(O, tn)

    # ---- VMEM budget -----------------------------------------------------
    itm = jnp.dtype(cdt).itemsize
    oitm = jnp.dtype(out_dtype).itemsize
    w2_bufs = 1 if grid_n == 1 else 2
    vmem_est = (
        E * H * itm                    # W1 (single-buffered)
        + w2_bufs * H * tn * itm       # W2 tile
        + (H + w2_bufs * tn) * 4       # biases (f32)
        + 2 * tm * E * itm             # x tile (double-buffered)
        + 2 * tm * tn * oitm           # out tile (double-buffered)
        + tm * H * itm                 # hidden scratch
        + tm * H * 4 + tm * tn * 4     # f32 matmul temporaries
    )
    vmem_limit = int(min(max(int(1.25 * vmem_est) + (4 << 20), 32 << 20), 60 << 20))

    # ---- cost hint for XLA -------------------------------------------------
    cost = pl.CostEstimate(
        flops=2 * M * (E * H + H * O),
        transcendentals=0,
        bytes_accessed=(M * E * itm + (E * H + H * O) * itm
                        + (H + O) * 4 + M * O * oitm),
    )

    single = pl.Buffered(1)
    w2_mode = pl.Buffered(1) if grid_n == 1 else pl.Buffered(2)

    out2d = pl.pallas_call(
        ffn_kernel,
        out_shape=jax.ShapeDtypeStruct((M, O), out_dtype),
        grid=(grid_m, grid_n),
        in_specs=[
            # x rows tile: re-DMA'd only when i changes (constant over j).
            pl.BlockSpec((tm, E), lambda i, j: (i, 0)),
            # Resident operands: single-buffered (constant index maps).
            pl.BlockSpec((E, H), lambda i, j: (0, 0), pipeline_mode=single),
            pl.BlockSpec((1, H), lambda i, j: (0, 0), pipeline_mode=single),
            pl.BlockSpec((H, tn), lambda i, j: (0, j), pipeline_mode=w2_mode),
            pl.BlockSpec((1, tn), lambda i, j: (0, j), pipeline_mode=w2_mode),
        ],
        out_specs=pl.BlockSpec((tm, tn), lambda i, j: (i, j)),
        scratch_shapes=[pltpu.VMEM((tm, H), cdt)],
        compiler_params=pltpu.CompilerParams(
            dimension_semantics=("parallel", "arbitrary"),
            vmem_limit_bytes=vmem_limit,
        ),
        cost_estimate=cost,
    )(x2d, w1_t, b1_r, w2_t, b2_r)

    return out2d.reshape(*lead, O)


def feedforward_reference(x, w1, b1, w2, b2):
    """Pure-JAX reference mirroring the PyTorch forward (dropout p=0)."""
    h = jnp.maximum(x @ w1.T + b1, 0.0)
    return h @ w2.T + b2


if __name__ == "__main__":
    # Small shapes: batch=2, seq=8, in_features=32, out_features=32 (hidden=8).
    B, T, E, O = 2, 8, 32, 32
    H = O // 4

    key = jax.random.PRNGKey(0)
    kx, k1, kb1, k2, kb2 = jax.random.split(key, 5)

    x = jax.random.normal(kx, (B, T, E), dtype=jnp.float32)

    # Deterministic PyTorch-style Linear params, shape (out, in) / (out,).
    bound1 = 1.0 / math.sqrt(E)
    bound2 = 1.0 / math.sqrt(H)
    w1 = jax.random.uniform(k1, (H, E), minval=-bound1, maxval=bound1,
                            dtype=jnp.float32)
    b1 = jax.random.uniform(kb1, (H,), minval=-bound1, maxval=bound1,
                            dtype=jnp.float32)
    w2 = jax.random.uniform(k2, (O, H), minval=-bound2, maxval=bound2,
                            dtype=jnp.float32)
    b2 = jax.random.uniform(kb2, (O,), minval=-bound2, maxval=bound2,
                            dtype=jnp.float32)

    out = feedforward_forward(x, w1, b1, w2, b2)
    out = jax.block_until_ready(out)

    ref = feedforward_reference(x, w1, b1, w2, b2)
    assert out.shape == (B, T, O)
    assert jnp.allclose(out, ref, atol=1e-5, rtol=1e-5), "mismatch vs reference"

    print("KERNEL_OK")
</pallas_src>

<mosaic_0001>
module attributes {stable_mosaic.version = 11 : i64} {
  func.func @ffn_kernel(%arg0: i32, %arg1: i32, %arg2: memref<8x32xf32, #tpu.memory_space<vmem>>, %arg3: memref<32x8xf32, #tpu.memory_space<vmem>>, %arg4: memref<1x8xf32, #tpu.memory_space<vmem>>, %arg5: memref<8x32xf32, #tpu.memory_space<vmem>>, %arg6: memref<1x32xf32, #tpu.memory_space<vmem>>, %arg7: memref<8x32xf32, #tpu.memory_space<vmem>>, %arg8: memref<8x8xf32, #tpu.memory_space<vmem>>) attributes {dimension_semantics = [#tpu.dimension_semantics<parallel>, #tpu.dimension_semantics<arbitrary>], iteration_bounds = array<i64: 2, 1>, scalar_prefetch = 0 : i64, scratch_operands = 1 : i64, tpu.core_type = #tpu.core_type<tc>, window_params = [{transform_indices = @transform_0, window_bounds = array<i64: 8, 32>}, {pipeline_mode = #tpu.pipeline_mode<synchronous>, transform_indices = @transform_1, window_bounds = array<i64: 32, 8>}, {pipeline_mode = #tpu.pipeline_mode<synchronous>, transform_indices = @transform_2, window_bounds = array<i64: 1, 8>}, {pipeline_mode = #tpu.pipeline_mode<synchronous>, transform_indices = @transform_3, window_bounds = array<i64: 8, 32>}, {pipeline_mode = #tpu.pipeline_mode<synchronous>, transform_indices = @transform_4, window_bounds = array<i64: 1, 32>}, {transform_indices = @transform_5, window_bounds = array<i64: 8, 32>}]} {
    %c0_i32 = arith.constant 0 : i32
    %0 = arith.cmpi eq, %arg1, %c0_i32 : i32
    %1 = arith.extui %0 : i1 to i32
    %c0_i32_0 = arith.constant 0 : i32
    %2 = arith.cmpi ne, %1, %c0_i32_0 : i32
    scf.if %2 {
      %c0_8 = arith.constant 0 : index
      %c0_9 = arith.constant 0 : index
      %10 = vector.load %arg2[%c0_8, %c0_9] : memref<8x32xf32, #tpu.memory_space<vmem>>, vector<8x32xf32>
      %c0_10 = arith.constant 0 : index
      %c0_11 = arith.constant 0 : index
      %11 = vector.load %arg3[%c0_10, %c0_11] : memref<32x8xf32, #tpu.memory_space<vmem>>, vector<32x8xf32>
      %cst_12 = arith.constant dense<0.000000e+00> : vector<8x8xf32>
      %12 = tpu.matmul %10, %11, %cst_12 {dimension_numbers = #tpu.dot_dimension_numbers<[1], [0], [0], [1], [0, 0, 1, 1], [], []>} : vector<8x32xf32>, vector<32x8xf32>, vector<8x8xf32> -> vector<8x8xf32>
      %c0_13 = arith.constant 0 : index
      %c0_14 = arith.constant 0 : index
      %13 = vector.load %arg4[%c0_13, %c0_14] : memref<1x8xf32, #tpu.memory_space<vmem>>, vector<1x8xf32>
      %14 = vector.broadcast %13 : vector<1x8xf32> to vector<8x8xf32>
      %15 = arith.addf %12, %14 : vector<8x8xf32>
      %cst_15 = arith.constant 0.000000e+00 : f32
      %16 = vector.broadcast %cst_15 : f32 to vector<8x8xf32>
      %17 = arith.maximumf %15, %16 : vector<8x8xf32>
      %c0_16 = arith.constant 0 : index
      %c0_17 = arith.constant 0 : index
      %18 = vector.load %arg8[%c0_16, %c0_17] : memref<8x8xf32, #tpu.memory_space<vmem>>, vector<8x8xf32>
      tpu.vector_store %arg8[%c0_16, %c0_17], %17 {strides = array<i32>} : memref<8x8xf32, #tpu.memory_space<vmem>>, vector<8x8xf32>,
    } else {
    }
    %c0 = arith.constant 0 : index
    %c0_1 = arith.constant 0 : index
    %3 = vector.load %arg8[%c0, %c0_1] : memref<8x8xf32, #tpu.memory_space<vmem>>, vector<8x8xf32>
    %c0_2 = arith.constant 0 : index
    %c0_3 = arith.constant 0 : index
    %4 = vector.load %arg5[%c0_2, %c0_3] : memref<8x32xf32, #tpu.memory_space<vmem>>, vector<8x32xf32>
    %cst = arith.constant dense<0.000000e+00> : vector<8x32xf32>
    %5 = tpu.matmul %3, %4, %cst {dimension_numbers = #tpu.dot_dimension_numbers<[1], [0], [0], [1], [0, 0, 1, 1], [], []>} : vector<8x8xf32>, vector<8x32xf32>, vector<8x32xf32> -> vector<8x32xf32>
    %c0_4 = arith.constant 0 : index
    %c0_5 = arith.constant 0 : index
    %6 = vector.load %arg6[%c0_4, %c0_5] : memref<1x32xf32, #tpu.memory_space<vmem>>, vector<1x32xf32>
    %7 = vector.broadcast %6 : vector<1x32xf32> to vector<8x32xf32>
    %8 = arith.addf %5, %7 : vector<8x32xf32>
    %c0_6 = arith.constant 0 : index
    %c0_7 = arith.constant 0 : index
    %9 = vector.load %arg7[%c0_6, %c0_7] : memref<8x32xf32, #tpu.memory_space<vmem>>, vector<8x32xf32>
    tpu.vector_store %arg7[%c0_6, %c0_7], %8 {strides = array<i32>} : memref<8x32xf32, #tpu.memory_space<vmem>>, vector<8x32xf32>,
    return
  }
  func.func @transform_0(%arg0: i32, %arg1: i32) -> (i32, i32) {
    %c0_i32 = arith.constant 0 : i32
    %c0_i32_0 = arith.constant 0 : i32
    return %arg0, %c0_i32 : i32, i32
  }
  func.func @transform_1(%arg0: i32, %arg1: i32) -> (i32, i32) {
    %c0_i32 = arith.constant 0 : i32
    %c0_i32_0 = arith.constant 0 : i32
    %c0_i32_1 = arith.constant 0 : i32
    return %c0_i32, %c0_i32_0 : i32, i32
  }
  func.func @transform_2(%arg0: i32, %arg1: i32) -> (i32, i32) {
    %c0_i32 = arith.constant 0 : i32
    %c0_i32_0 = arith.constant 0 : i32
    %c0_i32_1 = arith.constant 0 : i32
    return %c0_i32, %c0_i32_0 : i32, i32
  }
  func.func @transform_3(%arg0: i32, %arg1: i32) -> (i32, i32) {
    %c0_i32 = arith.constant 0 : i32
    %c0_i32_0 = arith.constant 0 : i32
    return %c0_i32, %arg1 : i32, i32
  }
  func.func @transform_4(%arg0: i32, %arg1: i32) -> (i32, i32) {
    %c0_i32 = arith.constant 0 : i32
    %c0_i32_0 = arith.constant 0 : i32
    return %c0_i32, %arg1 : i32, i32
  }
  func.func @transform_5(%arg0: i32, %arg1: i32) -> (i32, i32) {
    %c0_i32 = arith.constant 0 : i32
    return %arg0, %arg1 : i32, i32
  }
}

</mosaic_0001>

<llo_original>
// kernel: tpu_custom_call.1
$region0: #{tpu_custom_call.1}
  #allocation0 [shape = 'u32[]', space=smem, size = 0x4, offset = 0x4, fixed_abs, tag = 'smem constant byte address 0x4 - core index']
  #allocation1 [shape = 'u32[72,128]{1,0:T(1,128)}', space=vmem, size = 0x9000, scoped, tag = 'internal scratch']
  #allocation2 [shape = 'f32[8,8]{1,0:T(8,128)}', space=vmem, size = 0x1000, scoped, tag = 'scratch operand']
  %s0 = inlined_call_operand.vmem [shape: f32[16,32], index: 0, kind: input, shape index: {}]
  %s1 = inlined_call_operand.vmem [shape: f32[32,8], index: 1, kind: input, shape index: {}]
  %s2 = inlined_call_operand.vmem [shape: f32[1,8], index: 2, kind: input, shape index: {}]
  %s3 = inlined_call_operand.vmem [shape: f32[8,32], index: 3, kind: input, shape index: {}]
  %s4 = inlined_call_operand.vmem [shape: f32[1,32], index: 4, kind: input, shape index: {}]
  %s5 = inlined_call_operand.hbm [shape: f32[16,32], index: 5, kind: output, shape index: {}]
  %s6 = sld [smem:[#allocation0]]
  $region57: #{tpu_custom_call.1} parent=0
    _
  %s8 = ssub.s32 1, %s6
  %s9 = scalar_select 0, %s8, %s6
  $region1: #{tpu_custom_call.1} parent=0
    #allocation3 [shape = 'u8[8192]{0}', space=vmem, size = 0x2000, scoped, tag = 'output window, operand 0']
    #allocation4 [shape = 's32[2]{0}', space=sflag, size = 0x8, scoped, tag = 'scoped memory for tpu_custom_call.1']
    %10 = vsyncpa [#allocation4], 0
    %s11 = scalar_lea.sflag [#allocation4], 1
    %12 = vsyncpa %s11, 0
    loop: start=0, step=1, limit=4
    $region2: #{tpu_custom_call.1} parent=1 // loop_pre_header
      _
    $region3: #{tpu_custom_call.1} parent=1 // loop_header
      %s14 = sphi 0, %s18
      %p15 = scmp.ge.s32.totalorder %s14, 4
      %s21 = sphi 0, %s33
      %s22 = sphi 0, %s29
      %s23 = sphi 0, %s21
      %s24 = sphi 0, %s22
      %s25 = sphi 0, %s23
      %s26 = sphi 0, %s24
      %s36 = sphi 0, %s38
      %s39 = sphi 0, %s36
      %s40 = sphi 0, %s39
      %s56 = sphi 0, %s40
      %s60 = sphi 0, %s60
      %s62 = sphi 0, %s60
      %s63 = sphi 0, %s62
      %s77 = sphi 0, %s63
      %s81 = sphi 0, %s81
      %s83 = sphi 0, %s81
      %s84 = sphi 0, %s83
      %s98 = sphi 0, %s84
      %s104 = sphi 0, %s106
      %s107 = sphi 0, %s104
      %s108 = sphi 0, %s107
      %s124 = sphi 0, %s108
      %s130 = sphi 0, %s132
      %s133 = sphi 0, %s130
      %s134 = sphi 0, %s133
      %s150 = sphi 0, %s134
      %s158 = sphi 0, %s160
      %s161 = sphi 0, %s158
      %s162 = sphi 0, %s161
      %s178 = sphi 0, %s162
    $region4: #{tpu_custom_call.1} parent=1 // loop_header_branch
      %17 = sbr.rel (%p15) target = $region8
    $region5: #{tpu_custom_call.1} parent=1 // loop_body
      %s19 = ssub.s32 %s14, 1
      %s20 = ssub.s32 %s14, 2
      %s27 = sadd.s32 1, %s22
      %p28 = scmp.ge.s32.totalorder %s27, 1
      %s29 = scalar_select %p28, 0, %s27
      %s30 = sadd.s32 1, %s21
      %s31 = scalar_select %p28, %s30, %s21
      %p32 = scmp.ge.s32.totalorder %s31, 2
      %s33 = scalar_select %p32, 0, %s31
      %s34 = ssub.s32 %s21, %s33
      %p35 = scmp.eq.s32.totalorder %s34, 0
      %s37 = sadd.s32 %s36, 1
      %s38 = scalar_select %p35, %s36, %s37
      %p41 = pneg %p35
      %p42 = scmp.eq.s32.totalorder %s14, 1
      %p43 = por %p41, %p42
      %p44 = scmp.ne.s32.totalorder %s36, %s39
      %p45 = scmp.eq.s32.totalorder %s14, 0
      %p46 = por %p44, %p45
      %p47 = scmp.ne.s32.totalorder %s36, %s39
      %p48 = scmp.eq.s32.totalorder %s19, 1
      %p49 = por %p47, %p48
      %p50 = scmp.ne.s32.totalorder %s39, %s40
      %p51 = scmp.eq.s32.totalorder %s19, 0
      %p52 = por %p50, %p51
      %p53 = scmp.ne.s32.totalorder %s39, %s40
      %p54 = scmp.eq.s32.totalorder %s20, 1
      %p55 = por %p53, %p54
      %p57 = scmp.ne.s32.totalorder %s40, %s56
      %p58 = scmp.eq.s32.totalorder %s20, 0
      %p59 = por %p57, %p58
      %s61 = sadd.s32 %s60, 1
      %p64 = scmp.eq.s32.totalorder %s14, 1
      %p65 = scmp.ne.s32.totalorder %s60, %s62
      %p66 = scmp.eq.s32.totalorder %s14, 0
      %p67 = por %p65, %p66
      %p68 = scmp.ne.s32.totalorder %s60, %s62
      %p69 = scmp.eq.s32.totalorder %s19, 1
      %p70 = por %p68, %p69
      %p71 = scmp.ne.s32.totalorder %s62, %s63
      %p72 = scmp.eq.s32.totalorder %s19, 0
      %p73 = por %p71, %p72
      %p74 = scmp.ne.s32.totalorder %s62, %s63
      %p75 = scmp.eq.s32.totalorder %s20, 1
      %p76 = por %p74, %p75
      %p78 = scmp.ne.s32.totalorder %s63, %s77
      %p79 = scmp.eq.s32.totalorder %s20, 0
      %p80 = por %p78, %p79
      %s82 = sadd.s32 %s81, 1
      %p85 = scmp.eq.s32.totalorder %s14, 1
      %p86 = scmp.ne.s32.totalorder %s81, %s83
      %p87 = scmp.eq.s32.totalorder %s14, 0
      %p88 = por %p86, %p87
      %p89 = scmp.ne.s32.totalorder %s81, %s83
      %p90 = scmp.eq.s32.totalorder %s19, 1
      %p91 = por %p89, %p90
      %p92 = scmp.ne.s32.totalorder %s83, %s84
      %p93 = scmp.eq.s32.totalorder %s19, 0
      %p94 = por %p92, %p93
      %p95 = scmp.ne.s32.totalorder %s83, %s84
      %p96 = scmp.eq.s32.totalorder %s20, 1
      %p97 = por %p95, %p96
      %p99 = scmp.ne.s32.totalorder %s84, %s98
      %p100 = scmp.eq.s32.totalorder %s20, 0
      %p101 = por %p99, %p100
      %s102 = ssub.s32 %s22, %s29
      %p103 = scmp.eq.s32.totalorder %s102, 0
      %s105 = sadd.s32 %s104, 1
      %s106 = scalar_select %p103, %s104, %s105
      %p109 = pneg %p103
      %p110 = scmp.eq.s32.totalorder %s14, 1
      %p111 = por %p109, %p110
      %p112 = scmp.ne.s32.totalorder %s104, %s107
      %p113 = scmp.eq.s32.totalorder %s14, 0
      %p114 = por %p112, %p113
      %p115 = scmp.ne.s32.totalorder %s104, %s107
      %p116 = scmp.eq.s32.totalorder %s19, 1
      %p117 = por %p115, %p116
      %p118 = scmp.ne.s32.totalorder %s107, %s108
      %p119 = scmp.eq.s32.totalorder %s19, 0
      %p120 = por %p118, %p119
      %p121 = scmp.ne.s32.totalorder %s107, %s108
      %p122 = scmp.eq.s32.totalorder %s20, 1
      %p123 = por %p121, %p122
      %p125 = scmp.ne.s32.totalorder %s108, %s124
      %p126 = scmp.eq.s32.totalorder %s20, 0
      %p127 = por %p125, %p126
      %s128 = ssub.s32 %s22, %s29
      %p129 = scmp.eq.s32.totalorder %s128, 0
      %s131 = sadd.s32 %s130, 1
      %s132 = scalar_select %p129, %s130, %s131
      %p135 = pneg %p129
      %p136 = scmp.eq.s32.totalorder %s14, 1
      %p137 = por %p135, %p136
      %p138 = scmp.ne.s32.totalorder %s130, %s133
      %p139 = scmp.eq.s32.totalorder %s14, 0
      %p140 = por %p138, %p139
      %p141 = scmp.ne.s32.totalorder %s130, %s133
      %p142 = scmp.eq.s32.totalorder %s19, 1
      %p143 = por %p141, %p142
      %p144 = scmp.ne.s32.totalorder %s133, %s134
      %p145 = scmp.eq.s32.totalorder %s19, 0
      %p146 = por %p144, %p145
      %p147 = scmp.ne.s32.totalorder %s133, %s134
      %p148 = scmp.eq.s32.totalorder %s20, 1
      %p149 = por %p147, %p148
      %p151 = scmp.ne.s32.totalorder %s134, %s150
      %p152 = scmp.eq.s32.totalorder %s20, 0
      %p153 = por %p151, %p152
      %s154 = ssub.s32 %s21, %s33
      %s155 = ssub.s32 %s22, %s29
      %s156 = sor.u32 %s154, %s155
      %p157 = scmp.eq.s32.totalorder %s156, 0
      %s159 = sadd.s32 %s158, 1
      %s160 = scalar_select %p157, %s158, %s159
      %p163 = pneg %p157
      %p164 = scmp.eq.s32.totalorder %s14, 1
      %p165 = por %p163, %p164
      %p166 = scmp.ne.s32.totalorder %s158, %s161
      %p167 = scmp.eq.s32.totalorder %s14, 0
      %p168 = por %p166, %p167
      %p169 = scmp.ne.s32.totalorder %s158, %s161
      %p170 = scmp.eq.s32.totalorder %s19, 1
      %p171 = por %p169, %p170
      %p172 = scmp.ne.s32.totalorder %s161, %s162
      %p173 = scmp.eq.s32.totalorder %s19, 0
      %p174 = por %p172, %p173
      %p175 = scmp.ne.s32.totalorder %s161, %s162
      %p176 = scmp.eq.s32.totalorder %s20, 1
      %p177 = por %p175, %p176
      %p179 = scmp.ne.s32.totalorder %s162, %s178
      %p180 = scmp.eq.s32.totalorder %s20, 0
      %p181 = por %p179, %p180
      %p182 = scmp.le.s32.totalorder 1, %s14
      %p183 = scmp.lt.s32.totalorder %s14, 3
      %p184 = pnand %p182, %p183
      %p185 = pneg %p184
      // Predicated region
      $region9: #{tpu_custom_call.1} parent=5 // pred_check
        _
      $region10: #{tpu_custom_call.1} parent=5 // pred_check_branch
        %187 = sbr.rel (%p184) target = $region12
      $region11: #{tpu_custom_call.1} parent=5 // pred_region
        %s188 = ssub.s32 %s14, 1
        // Predicated region
        $region13: #{tpu_custom_call.1} parent=11 // pred_check
          %p189 = pneg %p73
        $region14: #{tpu_custom_call.1} parent=11 // pred_check_branch
          %191 = sbr.rel (%p189) target = $region16
        $region15: #{tpu_custom_call.1} parent=11 // pred_region
          _
        $region16: #{tpu_custom_call.1} parent=11 // pred_fallthru
          _
        // Predicated region
        $region17: #{tpu_custom_call.1} parent=11 // pred_check
          %p192 = pneg %p94
        $region18: #{tpu_custom_call.1} parent=11 // pred_check_branch
          %194 = sbr.rel (%p192) target = $region20
        $region19: #{tpu_custom_call.1} parent=11 // pred_region
          _
        $region20: #{tpu_custom_call.1} parent=11 // pred_fallthru
          _
        // Predicated region
        $region21: #{tpu_custom_call.1} parent=11 // pred_check
          %p195 = pneg %p120
        $region22: #{tpu_custom_call.1} parent=11 // pred_check_branch
          %197 = sbr.rel (%p195) target = $region24
        $region23: #{tpu_custom_call.1} parent=11 // pred_region
          %p198 = scmp.lt.s32.totalorder %s24, 0
          %s199 = scalar_select %p198, %s24, 0
          %s200 = smul.addr %s199, 8
          %s201 = scalar_lea.vmem %s3, %s200
        $region24: #{tpu_custom_call.1} parent=11 // pred_fallthru
          _
        // Predicated region
        $region25: #{tpu_custom_call.1} parent=11 // pred_check
          %p202 = pneg %p146
        $region26: #{tpu_custom_call.1} parent=11 // pred_check_branch
          %204 = sbr.rel (%p202) target = $region28
        $region27: #{tpu_custom_call.1} parent=11 // pred_region
          %p205 = scmp.lt.s32.totalorder %s24, 0
          %s206 = scalar_select %p205, %s24, 0
          %s207 = scalar_lea.vmem %s4, %s206
        $region28: #{tpu_custom_call.1} parent=11 // pred_fallthru
          _
      $region12: #{tpu_custom_call.1} parent=5 // pred_fallthru
        _
      %p208 = scmp.lt.s32.totalorder %s14, 2
      // Predicated region
      $region29: #{tpu_custom_call.1} parent=5 // pred_check
        %p209 = pneg %p208
      $region30: #{tpu_custom_call.1} parent=5 // pred_check_branch
        %211 = sbr.rel (%p209) target = $region32
      $region31: #{tpu_custom_call.1} parent=5 // pred_region
        // Predicated region
        $region33: #{tpu_custom_call.1} parent=31 // pred_check
          %p212 = pneg %p46
        $region34: #{tpu_custom_call.1} parent=31 // pred_check_branch
          %214 = sbr.rel (%p212) target = $region36
        $region35: #{tpu_custom_call.1} parent=31 // pred_region
          %p215 = scmp.lt.s32.totalorder %s21, 1
          %s216 = scalar_select %p215, %s21, 1
          %s217 = smul.addr %s216, 8
          %s218 = scalar_lea.vmem %s0, %s217
        $region36: #{tpu_custom_call.1} parent=31 // pred_fallthru
          _
      $region32: #{tpu_custom_call.1} parent=5 // pred_fallthru
        _
      %p219 = scmp.le.s32.totalorder 1, %s14
      %p220 = scmp.lt.s32.totalorder %s14, 3
      %p221 = pnand %p219, %p220
      %p222 = pneg %p221
      // Predicated region
      $region37: #{tpu_custom_call.1} parent=5 // pred_check
        _
      $region38: #{tpu_custom_call.1} parent=5 // pred_check_branch
        %224 = sbr.rel (%p221) target = $region40
      $region39: #{tpu_custom_call.1} parent=5 // pred_region
        %s225 = ssub.s32 %s14, 1
        %p226 = scmp.lt.s32.totalorder %s23, 1
        %s227 = scalar_select %p226, %s23, 1
        %s228 = smul.addr %s227, 8
        %s229 = scalar_lea.vmem %s0, %s228
        %p230 = pneg %p52
        %p231 = pneg %p49
        %p232 = pneg %p73
        %p233 = pneg %p70
        %p234 = pneg %p94
        %p235 = pneg %p91
        %p236 = scmp.lt.s32.totalorder %s24, 0
        %s237 = scalar_select %p236, %s24, 0
        %s238 = smul.addr %s237, 8
        %s239 = scalar_lea.vmem %s3, %s238
        %p240 = pneg %p120
        %p241 = pneg %p117
        %p242 = scmp.lt.s32.totalorder %s24, 0
        %s243 = scalar_select %p242, %s24, 0
        %s244 = scalar_lea.vmem %s4, %s243
        %p245 = pneg %p146
        %p246 = pneg %p143
        %p247 = pneg %p174
        %p248 = pneg %p171
        %s249 = sand.u32 %s161, 1
        %s250 = scalar_lea.sflag [#allocation4], %s249
        %s251 = sand.u32 %s161, 1
        %s252 = smul.addr %s251, 8
        %s253 = scalar_lea.vmem [#allocation3], %s252
        %p254 = scmp.lt.s32.totalorder %s23, 1
        %s255 = scalar_select %p254, %s23, 1
        %s256 = smul.addr %s255, 8
        %s257 = scalar_lea.vmem %s0, %s256
        %p258 = scmp.lt.s32.totalorder %s24, 0
        %s259 = scalar_select %p258, %s24, 0
        %s260 = smul.addr %s259, 8
        %s261 = scalar_lea.vmem %s3, %s260
        %p262 = scmp.lt.s32.totalorder %s24, 0
        %s263 = scalar_select %p262, %s24, 0
        %s264 = scalar_lea.vmem %s4, %s263
        %p265 = scmp.eq.s32.totalorder %s24, 0
        // Predicated region
        $region41: #{tpu_custom_call.1} parent=39 // pred_check
          %p266 = pneg %p265
        $region42: #{tpu_custom_call.1} parent=39 // pred_check_branch
          %268 = sbr.rel (%p266) target = $region44
        $region43: #{tpu_custom_call.1} parent=39 // pred_region
          %v269 = vld [vmem:[%s257] sm:$0xff]
          %v270 = vld [vmem:[%s1] sm:$0xff]
          %v271 = vld [vmem:[%s1 + $0x8] sm:$0xff]
          %v272 = vld [vmem:[%s1 + $0x10] sm:$0xff]
          %v273 = vld [vmem:[%s1 + $0x18] sm:$0xff]
          %v274 = vld [vmem:[%s2] sm:$0x1]
          %v276 = vperm.slane %v274, 0
          %vm278 = vcmask 261120
          %v280 = vsel %vm278, %v269, 0
          %282 = vmatpush.msra.mxu0 0.0
          %283 = vmatpush.msra.mxu0 0.0
          %284 = vmatpush.msra.mxu0 0.0
          %285 = vmatpush.msra.mxu0 0.0
          %286 = vmatpush.msra.mxu0 0.0
          %287 = vmatpush.msra.mxu0 0.0
          %288 = vmatpush.msra.mxu0 0.0
          %289 = vmatpush.msra.mxu0 0.0
          %290 = vmatpush.msra.mxu0 0.0
          %291 = vmatpush.msra.mxu0 0.0
          %292 = vmatpush.msra.mxu0 0.0
          %293 = vmatpush.msra.mxu0 0.0
          %294 = vmatpush.msra.mxu0 %v273
          %295 = vmatpush.msra.mxu0 %v272
          %296 = vmatpush.msra.mxu0 %v271
          %297 = vmatpush.msra.mxu0 %v270
          %298 = vmatmul.f32.gmra.mxu0 %v280
          %v299 = vpop.f32.mrf.mxu0
          %v300 = vadd.f32 %v276, %v299
          %301 = vdwg.mxu0
          %v302 = vmax.f32 %v300, 0.0
          %vm303 = vcmask 64512
          %304 = vst.msk [vmem:[#allocation2] sm:$0xff] %vm303, %v302
        $region44: #{tpu_custom_call.1} parent=39 // pred_fallthru
          _
        %v305 = vld [vmem:[#allocation2] sm:$0xff]
        %v306 = vld [vmem:[%s261] sm:$0xff]
        %v307 = vld [vmem:[%s264] sm:$0x1]
        %v309 = vperm.slane %v307, 0
        %vm311 = vcmask 64512
        %v313 = vsel %vm311, %v305, 0
        %315 = vmatpush.msra.mxu0 0.0
        %316 = vmatpush.msra.mxu0 0.0
        %317 = vmatpush.msra.mxu0 0.0
        %318 = vmatpush.msra.mxu0 0.0
        %319 = vmatpush.msra.mxu0 0.0
        %320 = vmatpush.msra.mxu0 0.0
        %321 = vmatpush.msra.mxu0 0.0
        %322 = vmatpush.msra.mxu0 0.0
        %323 = vmatpush.msra.mxu0 0.0
        %324 = vmatpush.msra.mxu0 0.0
        %325 = vmatpush.msra.mxu0 0.0
        %326 = vmatpush.msra.mxu0 0.0
        %327 = vmatpush.msra.mxu0 0.0
        %328 = vmatpush.msra.mxu0 0.0
        %329 = vmatpush.msra.mxu0 0.0
        %330 = vmatpush.msra.mxu0 %v306
        %331 = vmatmul.f32.gmra.mxu0 %v313
        %v332 = vpop.f32.mrf.mxu0
        %v333 = vadd.f32 %v309, %v332
        %334 = vdwg.mxu0
        %vm335 = vcmask 261120
        %336 = vst.msk [vmem:[%s253] sm:$0xff] %vm335, %v333
        %s337 = sand.u32 %s161, 1
        %s338 = scalar_lea.sflag [#allocation4], %s337
        %s339 = sand.u32 %s161, 1
        %s340 = smul.addr %s339, 8
        %s341 = scalar_lea.vmem [#allocation3], %s340
        // Predicated region
        $region45: #{tpu_custom_call.1} parent=39 // pred_check
          %p342 = pneg %p171
        $region46: #{tpu_custom_call.1} parent=39 // pred_check_branch
          %344 = sbr.rel (%p342) target = $region48
        $region47: #{tpu_custom_call.1} parent=39 // pred_region
          %346 = vsyncadd %s338, 0
          %s347 = sadd.s32 %s24, %s23
          %s348 = smul.addr %s347, 8
          %s349 = scalar_lea.hbm %s5, %s348
          %s351 = sshll.u32 %s341, 4
          %s352 = int_to_ptr.vmem [resolvable:$true] %s351
          %s353 = sshll.u32 %s349, 4
          %s354 = int_to_ptr.hbm [resolvable:$true] %s353
          %356 = dma.vmem_to_hbm [thread:$0]  %s352, 128, %s354, %s338
        $region48: #{tpu_custom_call.1} parent=39 // pred_fallthru
          _
      $region40: #{tpu_custom_call.1} parent=5 // pred_fallthru
        _
      %p357 = scmp.le.s32.totalorder 2, %s14
      // Predicated region
      $region49: #{tpu_custom_call.1} parent=5 // pred_check
        %p358 = pneg %p357
      $region50: #{tpu_custom_call.1} parent=5 // pred_check_branch
        %360 = sbr.rel (%p358) target = $region52
      $region51: #{tpu_custom_call.1} parent=5 // pred_region
        %s361 = ssub.s32 %s14, 2
        // Predicated region
        $region53: #{tpu_custom_call.1} parent=51 // pred_check
          %p362 = pneg %p177
        $region54: #{tpu_custom_call.1} parent=51 // pred_check_branch
          %364 = sbr.rel (%p362) target = $region56
        $region55: #{tpu_custom_call.1} parent=51 // pred_region
          %s365 = sand.u32 %s162, 1
          %s366 = scalar_lea.sflag [#allocation4], %s365
          %s367 = sand.u32 %s162, 1
          %s368 = smul.addr %s367, 8
          %s369 = scalar_lea.vmem [#allocation3], %s368
          %371 = dma.done %s366, 128
        $region56: #{tpu_custom_call.1} parent=51 // pred_fallthru
          _
      $region52: #{tpu_custom_call.1} parent=5 // pred_fallthru
        _
    $region6: #{tpu_custom_call.1} parent=1 // loop_footer
      %s18 = sadd.s32 1, %s14
    $region7: #{tpu_custom_call.1} parent=1 // loop_footer_branch
      %13 = sbr.rel target = $region3
    $region8: #{tpu_custom_call.1} parent=1 // loop_exit
      _
    %372 = vsyncpa [#allocation4], 1
    %s373 = scalar_lea.sflag [#allocation4], 1
    %374 = vsyncpa %s373, 1

</llo_original>
